<compile_context>
chip_gen: v7x
topology: tpu7x:2x2x1
jax: 0.10.0
libtpu: 0.0.40
codegen_flags: <defaults>
</compile_context>

<pallas_src>
import functools

import jax
import jax.numpy as jnp
from jax.experimental import pallas as pl
from jax.experimental.pallas import tpu as pltpu

EPS = 1e-5  # PyTorch BatchNorm2d default eps


def _round_up(x, m):
    return (x + m - 1) // m * m


def _m_layout(M):
    """Row padding / tile: pad only to sublane granularity (8) when possible."""
    Mpad = _round_up(M, 8)
    if Mpad % 256 == 0:
        return Mpad, 256
    if Mpad % 128 == 0:
        return Mpad, 128
    if Mpad <= 512:
        return Mpad, Mpad            # single M tile, multiple of 8
    Mpad = _round_up(M, 128)
    return Mpad, (256 if Mpad % 256 == 0 else 128)


def _tile_for(d):
    """Largest lane-aligned tile (<=512) that divides a 128-padded dim."""
    for t in (512, 256, 128):
        if d % t == 0:
            return t
    return d


# ---------------------------------------------------------------------------
# Pallas kernels
# ---------------------------------------------------------------------------

def _matmul_kernel(a_ref, b_ref, bias_ref, *rest, act, has_res):
    """K-tiled MXU matmul: acc(f32) += a(bf16) @ b(bf16); epilogue adds bias,
    optional residual and ReLU on the final K step.  `a_ref` may arrive in f32
    (aligned, un-copied activations) and is cast to bf16 on the VPU here."""
    if has_res:
        res_ref, o_ref, acc_ref = rest
    else:
        o_ref, acc_ref = rest
        res_ref = None
    k = pl.program_id(2)

    @pl.when(k == 0)
    def _():
        acc_ref[...] = jnp.zeros_like(acc_ref)

    a = a_ref[...]
    if a.dtype != jnp.bfloat16:
        a = a.astype(jnp.bfloat16)
    acc_ref[...] += jnp.dot(a, b_ref[...], preferred_element_type=jnp.float32)

    @pl.when(k == pl.num_programs(2) - 1)
    def _():
        out = acc_ref[...] + bias_ref[...]
        if has_res:
            out = out + res_ref[...]
        if act == "relu":
            out = jnp.maximum(out, 0.0)
        o_ref[...] = out


def matmul_bias_act(a, w_pad, bias_pad, n_valid, act=None, residual=None):
    """o = act(a @ w + bias [+ residual]).

    a        : (M, K) f32 activations.
    w_pad    : (Kpad, Npad) bf16  — pre-transposed / padded at construction.
    bias_pad : (1, Npad) f32.
    residual : optional (M, n_valid) f32 fused into the epilogue.
    """
    M, K = a.shape
    Kpad, Npad = w_pad.shape
    Mpad, tm = _m_layout(M)
    tn = _tile_for(Npad)
    tk = _tile_for(Kpad)
    gj = Npad // tn

    need_pad = (Mpad, Kpad) != (M, K)
    if need_pad:
        # pad once, in bf16, so the padded copy costs half the HBM bytes
        a_in = jnp.pad(a.astype(jnp.bfloat16), ((0, Mpad - M), (0, Kpad - K)))
    elif gj >= 4:
        # A tile is re-read for every N tile; pre-cast wins once gj is large
        a_in = a.astype(jnp.bfloat16)
    else:
        a_in = a  # f32 straight from the producer; cast inside the kernel

    args = [a_in, w_pad, bias_pad]
    in_specs = [
        pl.BlockSpec((tm, tk), lambda i, j, k: (i, k)),
        pl.BlockSpec((tk, tn), lambda i, j, k: (k, j)),
        pl.BlockSpec((1, tn), lambda i, j, k: (0, j)),
    ]
    has_res = residual is not None
    if has_res:
        if residual.shape != (Mpad, Npad):
            rM, rN = residual.shape
            residual = jnp.pad(residual, ((0, Mpad - rM), (0, Npad - rN)))
        args.append(residual)
        in_specs.append(pl.BlockSpec((tm, tn), lambda i, j, k: (i, j)))

    bytes_acc = (a_in.size * a_in.dtype.itemsize + w_pad.size * 2
                 + bias_pad.size * 4 + Mpad * Npad * 4
                 + (Mpad * Npad * 4 if has_res else 0))
    out = pl.pallas_call(
        functools.partial(_matmul_kernel, act=act, has_res=has_res),
        out_shape=jax.ShapeDtypeStruct((Mpad, Npad), jnp.float32),
        grid_spec=pltpu.PrefetchScalarGridSpec(
            num_scalar_prefetch=0,
            grid=(Mpad // tm, Npad // tn, Kpad // tk),
            in_specs=in_specs,
            out_specs=pl.BlockSpec((tm, tn), lambda i, j, k: (i, j)),
            scratch_shapes=[pltpu.VMEM((tm, tn), jnp.float32)],
        ),
        compiler_params=pltpu.CompilerParams(
            dimension_semantics=("parallel", "parallel", "arbitrary"),
            vmem_limit_bytes=48 * 1024 * 1024),
        cost_estimate=pl.CostEstimate(flops=2 * Mpad * Kpad * Npad,
                                      transcendentals=0,
                                      bytes_accessed=bytes_acc),
    )(*args)
    return out[:M, :n_valid]


def _pool_kernel(x_ref, o_ref, *, op, kk, inv):
    x = x_ref[...]                       # (tr, kk, C)
    acc = x[:, 0, :]
    for t in range(1, kk):               # unrolled VPU chain over the small window
        acc = jnp.maximum(acc, x[:, t, :]) if op == "max" else acc + x[:, t, :]
    o_ref[...] = acc if op == "max" else acc * inv


def pool_reduce(patches, op):
    """patches:(M, KK, C) -> (M, C) reducing the window axis (max or mean)."""
    M, KK, C = patches.shape
    tr = M if M <= 256 else 256
    Mpad = _round_up(M, tr)
    if Mpad != M:
        patches = jnp.pad(patches, ((0, Mpad - M), (0, 0), (0, 0)))
    out = pl.pallas_call(
        functools.partial(_pool_kernel, op=op, kk=KK, inv=1.0 / KK),
        out_shape=jax.ShapeDtypeStruct((Mpad, C), jnp.float32),
        grid_spec=pltpu.PrefetchScalarGridSpec(
            num_scalar_prefetch=0,
            grid=(Mpad // tr,),
            in_specs=[pl.BlockSpec((tr, KK, C), lambda i: (i, 0, 0))],
            out_specs=pl.BlockSpec((tr, C), lambda i: (i, 0)),
        ),
        compiler_params=pltpu.CompilerParams(dimension_semantics=("parallel",)),
    )(patches)
    return out[:M]


def _gap_kernel(x_ref, o_ref, acc_ref, *, inv):
    @pl.when(pl.program_id(0) == 0)
    def _():
        acc_ref[...] = jnp.zeros_like(acc_ref)

    acc_ref[...] += jnp.sum(x_ref[...], axis=1)

    @pl.when(pl.program_id(0) == pl.num_programs(0) - 1)
    def _():
        o_ref[...] = acc_ref[...] * inv


def global_avg_pool(x):
    """AdaptiveAvgPool2d((1,1)) + flatten: (N,H,W,C) -> (N,C), spatial axis
    tiled as a reduction grid so big feature maps never blow up VMEM."""
    N, H, W, C = x.shape
    KK = H * W
    Np = _round_up(N, 8)
    tkk = KK if KK <= 512 else 512
    KKp = _round_up(KK, tkk)
    xr = x.reshape(N, KK, C)
    if (Np, KKp) != (N, KK):
        xr = jnp.pad(xr, ((0, Np - N), (0, KKp - KK), (0, 0)))
    out = pl.pallas_call(
        functools.partial(_gap_kernel, inv=1.0 / KK),
        out_shape=jax.ShapeDtypeStruct((Np, C), jnp.float32),
        grid_spec=pltpu.PrefetchScalarGridSpec(
            num_scalar_prefetch=0,
            grid=(KKp // tkk,),
            in_specs=[pl.BlockSpec((Np, tkk, C), lambda k: (0, k, 0))],
            out_specs=pl.BlockSpec((Np, C), lambda k: (0, 0)),
            scratch_shapes=[pltpu.VMEM((Np, C), jnp.float32)],
        ),
        compiler_params=pltpu.CompilerParams(dimension_semantics=("arbitrary",)),
    )(xr)
    return out[:N]


def _mul_kernel(a_ref, b_ref, o_ref):
    o_ref[...] = a_ref[...] * b_ref[...]


def ew_mul(a, b):
    M, C = a.shape
    tr = M if M <= 256 else 256
    Mpad = _round_up(M, tr)
    if Mpad != M:
        a = jnp.pad(a, ((0, Mpad - M), (0, 0)))
        b = jnp.pad(b, ((0, Mpad - M), (0, 0)))
    out = pl.pallas_call(
        _mul_kernel,
        out_shape=jax.ShapeDtypeStruct((Mpad, C), jnp.float32),
        grid_spec=pltpu.PrefetchScalarGridSpec(
            num_scalar_prefetch=0,
            grid=(Mpad // tr,),
            in_specs=[pl.BlockSpec((tr, C), lambda i: (i, 0))] * 2,
            out_specs=pl.BlockSpec((tr, C), lambda i: (i, 0)),
        ),
        compiler_params=pltpu.CompilerParams(dimension_semantics=("parallel",)),
    )(a, b)
    return out[:M]


# ---------------------------------------------------------------------------
# Glue: im2col / conv / pool built on the Pallas kernels
# ---------------------------------------------------------------------------

def _extract_patches(x, kh, kw, stride, pad, pad_value):
    N, H, W, C = x.shape
    xp = jnp.pad(x, ((0, 0), (pad, pad), (pad, pad), (0, 0)),
                 constant_values=pad_value)
    Ho = (H + 2 * pad - kh) // stride + 1
    Wo = (W + 2 * pad - kw) // stride + 1
    cols = []
    for dy in range(kh):
        for dx in range(kw):
            cols.append(xp[:, dy:dy + stride * Ho:stride,
                           dx:dx + stride * Wo:stride, :])
    patches = jnp.stack(cols, axis=3)  # (N, Ho, Wo, kh*kw, C)
    return patches, Ho, Wo


def conv2d(x, p, stride=1, pad=0, act=None, residual=None):
    """NHWC conv with folded BN; bias / ReLU / optional residual fused into the
    matmul epilogue.  1x1 convolutions skip im2col entirely."""
    kh, kw, cin, cout = p["kh"], p["kw"], p["cin"], p["cout"]
    N = x.shape[0]
    if kh == 1 and kw == 1:
        if pad:
            x = jnp.pad(x, ((0, 0), (pad, pad), (pad, pad), (0, 0)))
        if stride > 1:
            x = x[:, ::stride, ::stride, :]
        Ho, Wo = x.shape[1], x.shape[2]
        a = x.reshape(N * Ho * Wo, cin)
    else:
        # TODO(synk): spatial convs still materialize im2col in HBM; moving the
        # (dy,dx) tap gather into the kernel (grid axis + accumulator) is the
        # next structural step to remove the kh*kw HBM blowup at larger shapes.
        patches, Ho, Wo = _extract_patches(x, kh, kw, stride, pad, 0.0)
        a = patches.reshape(N * Ho * Wo, kh * kw * cin)
    res = None if residual is None else residual.reshape(N * Ho * Wo, cout)
    out = matmul_bias_act(a, p["w"], p["b"], n_valid=cout, act=act, residual=res)
    return out.reshape(N, Ho, Wo, cout)


def pool2d(x, k, stride, pad, op):
    pv = -jnp.inf if op == "max" else 0.0
    patches, Ho, Wo = _extract_patches(x, k, k, stride, pad, pv)
    N, C = x.shape[0], x.shape[3]
    out = pool_reduce(patches.reshape(N * Ho * Wo, k * k, C), op)
    return out.reshape(N, Ho, Wo, C)


# ---------------------------------------------------------------------------
# Deterministic parameter construction (pre-transposed / padded / bf16 weights)
# ---------------------------------------------------------------------------

_KEY = jax.random.PRNGKey(0)
_KCOUNT = [0]


def _next_key():
    _KCOUNT[0] += 1
    return jax.random.fold_in(_KEY, _KCOUNT[0])


def _fold_bn(w, b, gamma, beta, mean, var):
    scale = gamma / jnp.sqrt(var + EPS)
    return w * scale[:, None, None, None], scale * (b - mean) + beta


def _pack_matmul_params(w_mat, bias, K, N):
    """Hoist the per-forward transpose/pad: w -> (Kpad, Npad) bf16 (lane-aligned,
    MXU-ready), bias -> (1, Npad) f32."""
    Kpad = _round_up(K, 128)
    Npad = _round_up(N, 128)
    w_pad = jnp.zeros((Kpad, Npad), jnp.bfloat16).at[:K, :N].set(
        w_mat.astype(jnp.bfloat16))
    b_pad = jnp.zeros((1, Npad), jnp.float32).at[0, :N].set(bias)
    return w_pad, b_pad


def make_conv_bn(cin, cout, k, conv_bias=False):
    fan_in = cin * k * k
    w = jax.random.normal(_next_key(), (cout, cin, k, k), jnp.float32) * (2.0 / fan_in) ** 0.5
    b = (0.01 * jax.random.normal(_next_key(), (cout,), jnp.float32)
         if conv_bias else jnp.zeros((cout,), jnp.float32))
    gamma = 1.0 + 0.1 * jax.random.normal(_next_key(), (cout,), jnp.float32)
    beta = 0.1 * jax.random.normal(_next_key(), (cout,), jnp.float32)
    mean = 0.01 * jax.random.normal(_next_key(), (cout,), jnp.float32)
    var = 1.0 + 0.1 * jnp.abs(jax.random.normal(_next_key(), (cout,), jnp.float32))
    w_f, b_f = _fold_bn(w, b, gamma, beta, mean, var)
    K = k * k * cin
    w_mat = jnp.transpose(w_f, (2, 3, 1, 0)).reshape(K, cout)   # (ky,kx,cin) x cout
    w_pad, b_pad = _pack_matmul_params(w_mat, b_f, K, cout)
    return {"w": w_pad, "b": b_pad, "kh": k, "kw": k, "cin": cin, "cout": cout}


def make_linear(fin, fout):
    w = jax.random.normal(_next_key(), (fout, fin), jnp.float32) * (1.0 / fin) ** 0.5
    b = 0.01 * jax.random.normal(_next_key(), (fout,), jnp.float32)
    w_pad, b_pad = _pack_matmul_params(w.T, b, fin, fout)
    return {"w": w_pad, "b": b_pad, "fout": fout}


def linear(x, p, act=None):
    return matmul_bias_act(x, p["w"], p["b"], n_valid=p["fout"], act=act)


# ---------------------------------------------------------------------------
# ResNet50 backbone (torchvision resnet50 architecture, synthetic weights)
# ---------------------------------------------------------------------------

def make_resnet50():
    p = {"conv1": make_conv_bn(3, 64, 7), "layers": []}
    cfg = [(64, 3, 1), (128, 4, 2), (256, 6, 2), (512, 3, 2)]
    inplanes = 64
    for width, nblocks, stride in cfg:
        layer = []
        for bi in range(nblocks):
            blk = {
                "stride": stride if bi == 0 else 1,
                "conv1": make_conv_bn(inplanes, width, 1),
                "conv2": make_conv_bn(width, width, 3),
                "conv3": make_conv_bn(width, width * 4, 1),
            }
            if bi == 0:
                blk["down"] = make_conv_bn(inplanes, width * 4, 1)
            layer.append(blk)
            inplanes = width * 4
        p["layers"].append(layer)
    return p


def bottleneck(x, blk):
    s = blk["stride"]
    out = conv2d(x, blk["conv1"], stride=1, pad=0, act="relu")
    out = conv2d(out, blk["conv2"], stride=s, pad=1, act="relu")
    identity = conv2d(x, blk["down"], stride=s, pad=0) if "down" in blk else x
    # residual add + ReLU fused into conv3's matmul epilogue (no separate kernel)
    return conv2d(out, blk["conv3"], stride=1, pad=0, act="relu", residual=identity)


def resnet50_features(x, p):
    r = conv2d(x, p["conv1"], stride=2, pad=3, act="relu")   # conv1+bn1+relu
    r = pool2d(r, 3, 2, 1, "max")                            # maxpool
    for layer in p["layers"]:                                # layer1..layer4
        for blk in layer:
            r = bottleneck(r, blk)
    return global_avg_pool(r)                                # (B, 2048)


# ---------------------------------------------------------------------------
# Color-analysis branches and heads
# ---------------------------------------------------------------------------

def make_branches():
    return {
        "color": [make_conv_bn(3, 32, 3, True), make_conv_bn(32, 64, 3, True),
                  make_conv_bn(64, 128, 3, True)],
        "texture": [make_conv_bn(3, 32, 5, True), make_conv_bn(32, 64, 5, True)],
        "chroma": [make_conv_bn(3, 32, 1, True), make_conv_bn(32, 64, 1, True)],
        "hist": [make_conv_bn(3, 32, 9, True), make_conv_bn(32, 64, 5, True)],
        "coherence": [make_conv_bn(3, 32, 7, True), make_conv_bn(32, 64, 5, True)],
    }


def color_branch(x, ps):
    h = conv2d(x, ps[0], 1, 1, "relu"); h = pool2d(h, 2, 2, 0, "max")
    h = conv2d(h, ps[1], 1, 1, "relu"); h = pool2d(h, 2, 2, 0, "max")
    h = conv2d(h, ps[2], 1, 1, "relu")
    return global_avg_pool(h)                                # (B, 128)


def texture_branch(x, ps):
    h = conv2d(x, ps[0], 1, 2, "relu"); h = pool2d(h, 2, 2, 0, "max")
    h = conv2d(h, ps[1], 1, 2, "relu")
    return global_avg_pool(h)                                # (B, 64)


def chroma_branch(x, ps):
    h = conv2d(x, ps[0], 1, 0, "relu")
    h = conv2d(h, ps[1], 1, 0, "relu")
    return global_avg_pool(h)                                # (B, 64)


def hist_branch(x, ps):
    h = conv2d(x, ps[0], 1, 4, "relu"); h = pool2d(h, 4, 4, 0, "mean")
    h = conv2d(h, ps[1], 1, 2, "relu")
    return global_avg_pool(h)                                # (B, 64)


def coherence_branch(x, ps):
    h = conv2d(x, ps[0], 1, 3, "relu"); h = pool2d(h, 2, 2, 0, "max")
    h = conv2d(h, ps[1], 1, 2, "relu")
    return global_avg_pool(h)                                # (B, 64)


NUM_FTRS = 2048
COMBINED = NUM_FTRS + 128 + 64 + 64 + 64 + 64                # 2432


def make_heads(num_classes=2):
    return {
        "attn": [make_linear(COMBINED, 256), make_linear(256, 6)],
        "color_attn": [make_linear(COMBINED, 256), make_linear(256, 6)],
        "fc": [make_linear(COMBINED, 512), make_linear(512, num_classes)],
        "color_fx": [make_linear(COMBINED, 128), make_linear(128, 64)],
    }


# ---------------------------------------------------------------------------
# Full forward pass
# ---------------------------------------------------------------------------

def color_aware_resnet_forward(x_nchw, params):
    x = jnp.transpose(x_nchw, (0, 2, 3, 1)).astype(jnp.float32)   # NCHW -> NHWC

    resnet_f = resnet50_features(x, params["resnet"])             # (B, 2048)
    br = params["branches"]
    color_f = color_branch(x, br["color"])                        # (B, 128)
    texture_f = texture_branch(x, br["texture"])                  # (B, 64)
    chroma_f = chroma_branch(x, br["chroma"])                     # (B, 64)
    hist_f = hist_branch(x, br["hist"])                           # (B, 64)
    coherence_f = coherence_branch(x, br["coherence"])            # (B, 64)

    feats = [resnet_f, color_f, texture_f, chroma_f, hist_f, coherence_f]
    combined = jnp.concatenate(feats, axis=1)                     # (B, 2432)

    hd = params["heads"]
    attn_logits = linear(linear(combined, hd["attn"][0], "relu"), hd["attn"][1])
    attn = jax.nn.softmax(attn_logits, axis=1)        # tiny (B,6) softmax: plain JAX glue
    cattn_logits = linear(linear(combined, hd["color_attn"][0], "relu"),
                          hd["color_attn"][1])
    _cattn = jax.nn.softmax(cattn_logits, axis=1)
    # NOTE: the reference also builds color_weighted_combined from _cattn but the
    # result is never used downstream; the dead re-weighting is skipped here to
    # avoid a wasted elementwise kernel / HBM round trip (outputs unchanged).

    # cat([f_i * attn[:, i:i+1]]) == combined * per-column broadcast of attn
    scales = jnp.concatenate(
        [jnp.broadcast_to(attn[:, i:i + 1], f.shape) for i, f in enumerate(feats)],
        axis=1)
    weighted_combined = ew_mul(combined, scales)                  # (B, 2432)

    color_repr = linear(linear(weighted_combined, hd["color_fx"][0], "relu"),
                        hd["color_fx"][1], "relu")                # (B, 64)
    # TODO(synk): nn.Dropout(0.5) is eval-mode identity here (no train-time RNG mask).
    h = linear(weighted_combined, hd["fc"][0], "relu")
    output = linear(h, hd["fc"][1])                               # (B, num_classes)
    return output, color_repr


if __name__ == "__main__":
    params = {"resnet": make_resnet50(),
              "branches": make_branches(),
              "heads": make_heads(num_classes=2)}
    x = jax.random.normal(jax.random.PRNGKey(0), (2, 3, 16, 16), jnp.float32)
    output, color_repr = color_aware_resnet_forward(x, params)
    jax.block_until_ready((output, color_repr))
    assert output.shape == (2, 2) and color_repr.shape == (2, 64)
    assert bool(jnp.all(jnp.isfinite(output))) and bool(jnp.all(jnp.isfinite(color_repr)))
    print("KERNEL_OK")
</pallas_src>

<mosaic_0001>
module attributes {stable_mosaic.version = 11 : i64} {
  func.func @_matmul_kernel(%arg0: i32, %arg1: i32, %arg2: i32, %arg3: memref<128x256xbf16, #tpu.memory_space<vmem>>, %arg4: memref<256x128xbf16, #tpu.memory_space<vmem>>, %arg5: memref<1x128xf32, #tpu.memory_space<vmem>>, %arg6: memref<128x128xf32, #tpu.memory_space<vmem>>, %arg7: memref<128x128xf32, #tpu.memory_space<vmem>>) attributes {dimension_semantics = [#tpu.dimension_semantics<parallel>, #tpu.dimension_semantics<parallel>, #tpu.dimension_semantics<arbitrary>], iteration_bounds = array<i64: 1, 1, 1>, scalar_prefetch = 0 : i64, scratch_operands = 1 : i64, tpu.core_type = #tpu.core_type<tc>, window_params = [{transform_indices = @transform_0, window_bounds = array<i64: 128, 256>}, {transform_indices = @transform_1, window_bounds = array<i64: 256, 128>}, {transform_indices = @transform_2, window_bounds = array<i64: 1, 128>}, {transform_indices = @transform_3, window_bounds = array<i64: 128, 128>}]} {
    %c0_i32 = arith.constant 0 : i32
    %0 = arith.cmpi eq, %arg2, %c0_i32 : i32
    %1 = arith.extui %0 : i1 to i32
    %c0_i32_0 = arith.constant 0 : i32
    %2 = arith.cmpi ne, %1, %c0_i32_0 : i32
    scf.if %2 {
      %cst_10 = arith.constant 0.000000e+00 : f32
      %12 = vector.broadcast %cst_10 : f32 to vector<128x128xf32>
      %c0_11 = arith.constant 0 : index
      %c0_12 = arith.constant 0 : index
      %13 = vector.load %arg7[%c0_11, %c0_12] : memref<128x128xf32, #tpu.memory_space<vmem>>, vector<128x128xf32>
      tpu.vector_store %arg7[%c0_11, %c0_12], %12 {strides = array<i32>} : memref<128x128xf32, #tpu.memory_space<vmem>>, vector<128x128xf32>,
    } else {
    }
    %c0 = arith.constant 0 : index
    %c0_1 = arith.constant 0 : index
    %3 = vector.load %arg3[%c0, %c0_1] : memref<128x256xbf16, #tpu.memory_space<vmem>>, vector<128x256xbf16>
    %c0_2 = arith.constant 0 : index
    %c0_3 = arith.constant 0 : index
    %4 = vector.load %arg7[%c0_2, %c0_3] : memref<128x128xf32, #tpu.memory_space<vmem>>, vector<128x128xf32>
    %c0_4 = arith.constant 0 : index
    %c0_5 = arith.constant 0 : index
    %5 = vector.load %arg4[%c0_4, %c0_5] : memref<256x128xbf16, #tpu.memory_space<vmem>>, vector<256x128xbf16>
    %cst = arith.constant dense<0.000000e+00> : vector<128x128xf32>
    %6 = tpu.matmul %3, %5, %cst {dimension_numbers = #tpu.dot_dimension_numbers<[1], [0], [0], [1], [0, 0, 1, 1], [], []>} : vector<128x256xbf16>, vector<256x128xbf16>, vector<128x128xf32> -> vector<128x128xf32>
    %7 = arith.addf %4, %6 : vector<128x128xf32>
    %c0_6 = arith.constant 0 : index
    %c0_7 = arith.constant 0 : index
    %8 = vector.load %arg7[%c0_6, %c0_7] : memref<128x128xf32, #tpu.memory_space<vmem>>, vector<128x128xf32>
    tpu.vector_store %arg7[%c0_6, %c0_7], %7 {strides = array<i32>} : memref<128x128xf32, #tpu.memory_space<vmem>>, vector<128x128xf32>,
    %c0_i32_8 = arith.constant 0 : i32
    %9 = arith.cmpi eq, %arg2, %c0_i32_8 : i32
    %10 = arith.extui %9 : i1 to i32
    %c0_i32_9 = arith.constant 0 : i32
    %11 = arith.cmpi ne, %10, %c0_i32_9 : i32
    scf.if %11 {
      %c0_10 = arith.constant 0 : index
      %c0_11 = arith.constant 0 : index
      %12 = vector.load %arg7[%c0_10, %c0_11] : memref<128x128xf32, #tpu.memory_space<vmem>>, vector<128x128xf32>
      %c0_12 = arith.constant 0 : index
      %c0_13 = arith.constant 0 : index
      %13 = vector.load %arg5[%c0_12, %c0_13] : memref<1x128xf32, #tpu.memory_space<vmem>>, vector<1x128xf32>
      %14 = vector.broadcast %13 : vector<1x128xf32> to vector<128x128xf32>
      %15 = arith.addf %12, %14 : vector<128x128xf32>
      %cst_14 = arith.constant 0.000000e+00 : f32
      %16 = vector.broadcast %cst_14 : f32 to vector<128x128xf32>
      %17 = arith.maximumf %15, %16 : vector<128x128xf32>
      %c0_15 = arith.constant 0 : index
      %c0_16 = arith.constant 0 : index
      %18 = vector.load %arg6[%c0_15, %c0_16] : memref<128x128xf32, #tpu.memory_space<vmem>>, vector<128x128xf32>
      tpu.vector_store %arg6[%c0_15, %c0_16], %17 {strides = array<i32>} : memref<128x128xf32, #tpu.memory_space<vmem>>, vector<128x128xf32>,
    } else {
    }
    return
  }
  func.func @transform_0(%arg0: i32, %arg1: i32, %arg2: i32) -> (i32, i32) {
    %c0_i32 = arith.constant 0 : i32
    return %arg0, %arg2 : i32, i32
  }
  func.func @transform_1(%arg0: i32, %arg1: i32, %arg2: i32) -> (i32, i32) {
    %c0_i32 = arith.constant 0 : i32
    return %arg2, %arg1 : i32, i32
  }
  func.func @transform_2(%arg0: i32, %arg1: i32, %arg2: i32) -> (i32, i32) {
    %c0_i32 = arith.constant 0 : i32
    %c0_i32_0 = arith.constant 0 : i32
    return %c0_i32, %arg1 : i32, i32
  }
  func.func @transform_3(%arg0: i32, %arg1: i32, %arg2: i32) -> (i32, i32) {
    %c0_i32 = arith.constant 0 : i32
    return %arg0, %arg1 : i32, i32
  }
}

</mosaic_0001>

<llo_original>
// kernel: tpu_custom_call.1
$region0: #{tpu_custom_call.1}
  #allocation0 [shape = 'u32[]', space=smem, size = 0x4, offset = 0x4, fixed_abs, tag = 'smem constant byte address 0x4 - core index']
  #allocation1 [shape = 'u32[144,128]{1,0:T(1,128)}', space=vmem, size = 0x12000, scoped, tag = 'internal scratch']
  #allocation2 [shape = 'f32[128,128]{1,0:T(8,128)}', space=vmem, size = 0x10000, scoped, tag = 'scratch operand']
  %s0 = inlined_call_operand.hbm [shape: bf16[128,256], index: 0, kind: input, shape index: {}]
  %s1 = inlined_call_operand.hbm [shape: bf16[256,128], index: 1, kind: input, shape index: {}]
  %s2 = inlined_call_operand.vmem [shape: f32[1,128], index: 2, kind: input, shape index: {}]
  %s3 = inlined_call_operand.hbm [shape: f32[128,128], index: 3, kind: output, shape index: {}]
  %s4 = sld [smem:[#allocation0]]
  $region38: #{tpu_custom_call.1} parent=0
    _
  %s6 = ssub.s32 1, %s4
  %s7 = scalar_select 0, %s6, %s4
  $region1: #{tpu_custom_call.1} parent=0
    #allocation3 [shape = 'u8[65536]{0}', space=vmem, size = 0x10000, scoped, tag = 'input window, operand 0, single buffered']
    #allocation4 [shape = 's32[1]{0}', space=sflag, size = 0x4, scoped, tag = 'scoped memory for tpu_custom_call.1']
    #allocation5 [shape = 's32[1]{0}', space=sflag, size = 0x4, scoped, tag = 'scoped memory for tpu_custom_call.1']
    #allocation6 [shape = 'u8[65536]{0}', space=vmem, size = 0x10000, scoped, tag = 'input window, operand 1, single buffered']
    #allocation7 [shape = 's32[1]{0}', space=sflag, size = 0x4, scoped, tag = 'scoped memory for tpu_custom_call.1']
    #allocation8 [shape = 'u8[65536]{0}', space=vmem, size = 0x10000, scoped, tag = 'output window, operand 0, single buffered']
    %8 = vsyncpa [#allocation4], 0
    %9 = vsyncpa [#allocation7], 0
    %10 = vsyncpa [#allocation5], 0
    // Predicated region
    $region2: #{tpu_custom_call.1} parent=1 // pred_check
      _
    $region3: #{tpu_custom_call.1} parent=1 // pred_check_branch
      %12 = sbr.rel (0) target = $region5
    $region4: #{tpu_custom_call.1} parent=1 // pred_region
      %s14 = ssub.s32 2048, 2048
      %15 = vsyncadd [#allocation4], %s14
      %s16 = sshll.u32 [#allocation3], 4
      %s17 = int_to_ptr.vmem [resolvable:$true] %s16
      %22 = dma.hbm_to_vmem [thread:$0]  %s0, 2048, %s17, [#allocation4], 128, 128, 8
    $region5: #{tpu_custom_call.1} parent=1 // pred_fallthru
      _
    // Predicated region
    $region6: #{tpu_custom_call.1} parent=1 // pred_check
      _
    $region7: #{tpu_custom_call.1} parent=1 // pred_check_branch
      %24 = sbr.rel (0) target = $region9
    $region8: #{tpu_custom_call.1} parent=1 // pred_region
      %s26 = ssub.s32 2048, 2048
      %27 = vsyncadd [#allocation7], %s26
      %s28 = sshll.u32 [#allocation6], 4
      %s29 = int_to_ptr.vmem [resolvable:$true] %s28
      %34 = dma.hbm_to_vmem [thread:$0]  %s1, 2048, %s29, [#allocation7], 64, 64, 4
    $region9: #{tpu_custom_call.1} parent=1 // pred_fallthru
      _
    // Predicated region
    $region10: #{tpu_custom_call.1} parent=1 // pred_check
      _
    $region11: #{tpu_custom_call.1} parent=1 // pred_check_branch
      %36 = sbr.rel (0) target = $region13
    $region12: #{tpu_custom_call.1} parent=1 // pred_region
      _
    $region13: #{tpu_custom_call.1} parent=1 // pred_fallthru
      _
    // Predicated region
    $region14: #{tpu_custom_call.1} parent=1 // pred_check
      _
    $region15: #{tpu_custom_call.1} parent=1 // pred_check_branch
      %38 = sbr.rel (0) target = $region17
    $region16: #{tpu_custom_call.1} parent=1 // pred_region
      %39 = dma.done [#allocation4], 2048
    $region17: #{tpu_custom_call.1} parent=1 // pred_fallthru
      _
    // Predicated region
    $region18: #{tpu_custom_call.1} parent=1 // pred_check
      _
    $region19: #{tpu_custom_call.1} parent=1 // pred_check_branch
      %41 = sbr.rel (0) target = $region21
    $region20: #{tpu_custom_call.1} parent=1 // pred_region
      %42 = dma.done [#allocation7], 2048
    $region21: #{tpu_custom_call.1} parent=1 // pred_fallthru
      _
    %p44 = scmp.eq.s32.totalorder 0, 0
    // Predicated region
    $region22: #{tpu_custom_call.1} parent=1 // pred_check
      %p45 = pneg %p44
    $region23: #{tpu_custom_call.1} parent=1 // pred_check_branch
      %47 = sbr.rel (%p45) target = $region25
    $region24: #{tpu_custom_call.1} parent=1 // pred_region
      %48 = vst [vmem:[#allocation2] sm:$0xff] 0.0
      %49 = vst [vmem:[#allocation2 + $0x8] sm:$0xff] 0.0
      %50 = vst [vmem:[#allocation2 + $0x10] sm:$0xff] 0.0
      %51 = vst [vmem:[#allocation2 + $0x18] sm:$0xff] 0.0
      %52 = vst [vmem:[#allocation2 + $0x20] sm:$0xff] 0.0
      %53 = vst [vmem:[#allocation2 + $0x28] sm:$0xff] 0.0
      %54 = vst [vmem:[#allocation2 + $0x30] sm:$0xff] 0.0
      %55 = vst [vmem:[#allocation2 + $0x38] sm:$0xff] 0.0
      %56 = vst [vmem:[#allocation2 + $0x40] sm:$0xff] 0.0
      %57 = vst [vmem:[#allocation2 + $0x48] sm:$0xff] 0.0
      %58 = vst [vmem:[#allocation2 + $0x50] sm:$0xff] 0.0
      %59 = vst [vmem:[#allocation2 + $0x58] sm:$0xff] 0.0
      %60 = vst [vmem:[#allocation2 + $0x60] sm:$0xff] 0.0
      %61 = vst [vmem:[#allocation2 + $0x68] sm:$0xff] 0.0
      %62 = vst [vmem:[#allocation2 + $0x70] sm:$0xff] 0.0
      %63 = vst [vmem:[#allocation2 + $0x78] sm:$0xff] 0.0
    $region25: #{tpu_custom_call.1} parent=1 // pred_fallthru
      _
    %v64 = vld [vmem:[#allocation3] sm:$0xff]
    %v65 = vld [vmem:[#allocation3 + $0x8] sm:$0xff]
    %v66 = vld [vmem:[#allocation3 + $0x10] sm:$0xff]
    %v67 = vld [vmem:[#allocation3 + $0x18] sm:$0xff]
    %v68 = vld [vmem:[#allocation3 + $0x20] sm:$0xff]
    %v69 = vld [vmem:[#allocation3 + $0x28] sm:$0xff]
    %v70 = vld [vmem:[#allocation3 + $0x30] sm:$0xff]
    %v71 = vld [vmem:[#allocation3 + $0x38] sm:$0xff]
    %v72 = vld [vmem:[#allocation3 + $0x40] sm:$0xff]
    %v73 = vld [vmem:[#allocation3 + $0x48] sm:$0xff]
    %v74 = vld [vmem:[#allocation3 + $0x50] sm:$0xff]
    %v75 = vld [vmem:[#allocation3 + $0x58] sm:$0xff]
    %v76 = vld [vmem:[#allocation3 + $0x60] sm:$0xff]
    %v77 = vld [vmem:[#allocation3 + $0x68] sm:$0xff]
    %v78 = vld [vmem:[#allocation3 + $0x70] sm:$0xff]
    %v79 = vld [vmem:[#allocation3 + $0x78] sm:$0xff]
    %v80 = vld [vmem:[#allocation2] sm:$0xff]
    %v81 = vld [vmem:[#allocation2 + $0x8] sm:$0xff]
    %v82 = vld [vmem:[#allocation2 + $0x10] sm:$0xff]
    %v83 = vld [vmem:[#allocation2 + $0x18] sm:$0xff]
    %v84 = vld [vmem:[#allocation2 + $0x20] sm:$0xff]
    %v85 = vld [vmem:[#allocation2 + $0x28] sm:$0xff]
    %v86 = vld [vmem:[#allocation2 + $0x30] sm:$0xff]
    %v87 = vld [vmem:[#allocation2 + $0x38] sm:$0xff]
    %v88 = vld [vmem:[#allocation2 + $0x40] sm:$0xff]
    %v89 = vld [vmem:[#allocation2 + $0x48] sm:$0xff]
    %v90 = vld [vmem:[#allocation2 + $0x50] sm:$0xff]
    %v91 = vld [vmem:[#allocation2 + $0x58] sm:$0xff]
    %v92 = vld [vmem:[#allocation2 + $0x60] sm:$0xff]
    %v93 = vld [vmem:[#allocation2 + $0x68] sm:$0xff]
    %v94 = vld [vmem:[#allocation2 + $0x70] sm:$0xff]
    %v95 = vld [vmem:[#allocation2 + $0x78] sm:$0xff]
    %v96 = vld [vmem:[#allocation6] sm:$0xf]
    %v97 = vld [vmem:[#allocation6 + $0x4] sm:$0xf]
    %v98 = vld [vmem:[#allocation6 + $0x8] sm:$0xf]
    %v99 = vld [vmem:[#allocation6 + $0xc] sm:$0xf]
    %v100 = vld [vmem:[#allocation6 + $0x10] sm:$0xf]
    %v101 = vld [vmem:[#allocation6 + $0x14] sm:$0xf]
    %v102 = vld [vmem:[#allocation6 + $0x18] sm:$0xf]
    %v103 = vld [vmem:[#allocation6 + $0x1c] sm:$0xf]
    %v104 = vld [vmem:[#allocation6 + $0x20] sm:$0xf]
    %v105 = vld [vmem:[#allocation6 + $0x24] sm:$0xf]
    %v106 = vld [vmem:[#allocation6 + $0x28] sm:$0xf]
    %v107 = vld [vmem:[#allocation6 + $0x2c] sm:$0xf]
    %v108 = vld [vmem:[#allocation6 + $0x30] sm:$0xf]
    %v109 = vld [vmem:[#allocation6 + $0x34] sm:$0xf]
    %v110 = vld [vmem:[#allocation6 + $0x38] sm:$0xf]
    %v111 = vld [vmem:[#allocation6 + $0x3c] sm:$0xf]
    %v112 = vld [vmem:[#allocation6 + $0x40] sm:$0xf]
    %v113 = vld [vmem:[#allocation6 + $0x44] sm:$0xf]
    %v114 = vld [vmem:[#allocation6 + $0x48] sm:$0xf]
    %v115 = vld [vmem:[#allocation6 + $0x4c] sm:$0xf]
    %v116 = vld [vmem:[#allocation6 + $0x50] sm:$0xf]
    %v117 = vld [vmem:[#allocation6 + $0x54] sm:$0xf]
    %v118 = vld [vmem:[#allocation6 + $0x58] sm:$0xf]
    %v119 = vld [vmem:[#allocation6 + $0x5c] sm:$0xf]
    %v120 = vld [vmem:[#allocation6 + $0x60] sm:$0xf]
    %v121 = vld [vmem:[#allocation6 + $0x64] sm:$0xf]
    %v122 = vld [vmem:[#allocation6 + $0x68] sm:$0xf]
    %v123 = vld [vmem:[#allocation6 + $0x6c] sm:$0xf]
    %v124 = vld [vmem:[#allocation6 + $0x70] sm:$0xf]
    %v125 = vld [vmem:[#allocation6 + $0x74] sm:$0xf]
    %v126 = vld [vmem:[#allocation6 + $0x78] sm:$0xf]
    %v127 = vld [vmem:[#allocation6 + $0x7c] sm:$0xf]
    %v144 = vunpack.c.l.b16 %v64
    %v145 = vunpack.c.h.b16 %v64
    %v146 = vunpack.c.l.b16 %v65
    %v147 = vunpack.c.h.b16 %v65
    %v148 = vunpack.c.l.b16 %v66
    %v149 = vunpack.c.h.b16 %v66
    %v150 = vunpack.c.l.b16 %v67
    %v151 = vunpack.c.h.b16 %v67
    %v152 = vunpack.c.l.b16 %v68
    %v153 = vunpack.c.h.b16 %v68
    %v154 = vunpack.c.l.b16 %v69
    %v155 = vunpack.c.h.b16 %v69
    %v156 = vunpack.c.l.b16 %v70
    %v157 = vunpack.c.h.b16 %v70
    %v158 = vunpack.c.l.b16 %v71
    %v159 = vunpack.c.h.b16 %v71
    %v160 = vunpack.c.l.b16 %v72
    %v161 = vunpack.c.h.b16 %v72
    %v162 = vunpack.c.l.b16 %v73
    %v163 = vunpack.c.h.b16 %v73
    %v164 = vunpack.c.l.b16 %v74
    %v165 = vunpack.c.h.b16 %v74
    %v166 = vunpack.c.l.b16 %v75
    %v167 = vunpack.c.h.b16 %v75
    %v168 = vunpack.c.l.b16 %v76
    %v169 = vunpack.c.h.b16 %v76
    %v170 = vunpack.c.l.b16 %v77
    %v171 = vunpack.c.h.b16 %v77
    %v172 = vunpack.c.l.b16 %v78
    %v173 = vunpack.c.h.b16 %v78
    %v174 = vunpack.c.l.b16 %v79
    %v175 = vunpack.c.h.b16 %v79
    %v176 = vpack.c.b16 %v146, %v144
    %v177 = vpack.c.b16 %v147, %v145
    %v178 = vpack.c.b16 %v150, %v148
    %v179 = vpack.c.b16 %v151, %v149
    %v180 = vpack.c.b16 %v154, %v152
    %v181 = vpack.c.b16 %v155, %v153
    %v182 = vpack.c.b16 %v158, %v156
    %v183 = vpack.c.b16 %v159, %v157
    %v184 = vpack.c.b16 %v162, %v160
    %v185 = vpack.c.b16 %v163, %v161
    %v186 = vpack.c.b16 %v166, %v164
    %v187 = vpack.c.b16 %v167, %v165
    %v188 = vpack.c.b16 %v170, %v168
    %v189 = vpack.c.b16 %v171, %v169
    %v190 = vpack.c.b16 %v174, %v172
    %v191 = vpack.c.b16 %v175, %v173
    %v240 = vunpack.c.l.b16 %v96
    %v241 = vunpack.c.l.b16 %v97
    %v242 = vunpack.c.l.b16 %v98
    %v243 = vunpack.c.l.b16 %v99
    %v244 = vunpack.c.l.b16 %v100
    %v245 = vunpack.c.l.b16 %v101
    %v246 = vunpack.c.l.b16 %v102
    %v247 = vunpack.c.l.b16 %v103
    %v248 = vunpack.c.l.b16 %v104
    %v249 = vunpack.c.l.b16 %v105
    %v250 = vunpack.c.l.b16 %v106
    %v251 = vunpack.c.l.b16 %v107
    %v252 = vunpack.c.l.b16 %v108
    %v253 = vunpack.c.l.b16 %v109
    %v254 = vunpack.c.l.b16 %v110
    %v255 = vunpack.c.l.b16 %v111
    %v256 = vunpack.c.l.b16 %v112
    %v257 = vunpack.c.l.b16 %v113
    %v258 = vunpack.c.l.b16 %v114
    %v259 = vunpack.c.l.b16 %v115
    %v260 = vunpack.c.l.b16 %v116
    %v261 = vunpack.c.l.b16 %v117
    %v262 = vunpack.c.l.b16 %v118
    %v263 = vunpack.c.l.b16 %v119
    %v264 = vunpack.c.l.b16 %v120
    %v265 = vunpack.c.l.b16 %v121
    %v266 = vunpack.c.l.b16 %v122
    %v267 = vunpack.c.l.b16 %v123
    %v268 = vunpack.c.l.b16 %v124
    %v269 = vunpack.c.l.b16 %v125
    %v270 = vunpack.c.l.b16 %v126
    %v271 = vunpack.c.l.b16 %v127
    %v272 = vpack.c.b16 %v241, %v240
    %v273 = vpack.c.b16 %v243, %v242
    %v274 = vpack.c.b16 %v245, %v244
    %v275 = vpack.c.b16 %v247, %v246
    %v276 = vpack.c.b16 %v249, %v248
    %v277 = vpack.c.b16 %v251, %v250
    %v278 = vpack.c.b16 %v253, %v252
    %v279 = vpack.c.b16 %v255, %v254
    %v280 = vpack.c.b16 %v257, %v256
    %v281 = vpack.c.b16 %v259, %v258
    %v282 = vpack.c.b16 %v261, %v260
    %v283 = vpack.c.b16 %v263, %v262
    %v284 = vpack.c.b16 %v265, %v264
    %v285 = vpack.c.b16 %v267, %v266
    %v286 = vpack.c.b16 %v269, %v268
    %v287 = vpack.c.b16 %v271, %v270
    %304 = vmatprep.subr.bf16.mxu0 0
    %305 = vmatpush1.bf16.msra.mxu0 %v272
    %306 = vmatprep.subr.bf16.mxu0 0
    %307 = vmatpush1.bf16.msra.mxu0 %v273
    %308 = vmatprep.subr.bf16.mxu0 0
    %309 = vmatpush1.bf16.msra.mxu0 %v274
    %310 = vmatprep.subr.bf16.mxu0 0
    %311 = vmatpush1.bf16.msra.mxu0 %v275
    %312 = vmatprep.subr.bf16.mxu0 0
    %313 = vmatpush1.bf16.msra.mxu0 %v276
    %314 = vmatprep.subr.bf16.mxu0 0
    %315 = vmatpush1.bf16.msra.mxu0 %v277
    %316 = vmatprep.subr.bf16.mxu0 0
    %317 = vmatpush1.bf16.msra.mxu0 %v278
    %318 = vmatprep.subr.bf16.mxu0 0
    %319 = vmatpush1.bf16.msra.mxu0 %v279
    %320 = vmatprep.subr.bf16.mxu0 0
    %321 = vmatpush1.bf16.msra.mxu0 %v280
    %322 = vmatprep.subr.bf16.mxu0 0
    %323 = vmatpush1.bf16.msra.mxu0 %v281
    %324 = vmatprep.subr.bf16.mxu0 0
    %325 = vmatpush1.bf16.msra.mxu0 %v282
    %326 = vmatprep.subr.bf16.mxu0 0
    %327 = vmatpush1.bf16.msra.mxu0 %v283
    %328 = vmatprep.subr.bf16.mxu0 0
    %329 = vmatpush1.bf16.msra.mxu0 %v284
    %330 = vmatprep.subr.bf16.mxu0 0
    %331 = vmatpush1.bf16.msra.mxu0 %v285
    %332 = vmatprep.subr.bf16.mxu0 0
    %333 = vmatpush1.bf16.msra.mxu0 %v286
    %334 = vmatprep.subr.bf16.mxu0 0
    %335 = vmatpush1.bf16.msra.mxu0 %v287
    %336 = vmatprep.mubr.bf16.mxu0 %v177
    %337 = vmatmul.mubr.bf16.gmra.mrb[0].mxu0 %v176
    %v338 = vpop.f32.mrb[0].mxu0
    %v339 = vadd.f32 0.0, %v338
    %v340 = vpop.f32.mrb[0].mxu0
    %v341 = vpop.f32.mrb[0].mxu0
    %v342 = vadd.f32 0.0, %v341
    %v343 = vpop.f32.mrb[0].mxu0
    %344 = vmatprep.mubr.bf16.mxu0 %v179
    %345 = vmatmul.mubr.bf16.gmra.mrb[0].mxu0 %v178
    %v346 = vpop.f32.mrb[0].mxu0
    %v347 = vadd.f32 0.0, %v346
    %v348 = vpop.f32.mrb[0].mxu0
    %v349 = vpop.f32.mrb[0].mxu0
    %v350 = vadd.f32 0.0, %v349
    %v351 = vpop.f32.mrb[0].mxu0
    %352 = vmatprep.mubr.bf16.mxu0 %v181
    %353 = vmatmul.mubr.bf16.gmra.mrb[0].mxu0 %v180
    %v354 = vpop.f32.mrb[0].mxu0
    %v355 = vadd.f32 0.0, %v354
    %v356 = vpop.f32.mrb[0].mxu0
    %v357 = vpop.f32.mrb[0].mxu0
    %v358 = vadd.f32 0.0, %v357
    %v359 = vpop.f32.mrb[0].mxu0
    %360 = vmatprep.mubr.bf16.mxu0 %v183
    %361 = vmatmul.mubr.bf16.gmra.mrb[0].mxu0 %v182
    %v362 = vpop.f32.mrb[0].mxu0
    %v363 = vadd.f32 0.0, %v362
    %v364 = vpop.f32.mrb[0].mxu0
    %v365 = vpop.f32.mrb[0].mxu0
    %v366 = vadd.f32 0.0, %v365
    %v367 = vpop.f32.mrb[0].mxu0
    %368 = vmatprep.mubr.bf16.mxu0 %v185
    %369 = vmatmul.mubr.bf16.gmra.mrb[0].mxu0 %v184
    %v370 = vpop.f32.mrb[0].mxu0
    %v371 = vadd.f32 0.0, %v370
    %v372 = vpop.f32.mrb[0].mxu0
    %v373 = vpop.f32.mrb[0].mxu0
    %v374 = vadd.f32 0.0, %v373
    %v375 = vpop.f32.mrb[0].mxu0
    %376 = vmatprep.mubr.bf16.mxu0 %v187
    %377 = vmatmul.mubr.bf16.gmra.mrb[0].mxu0 %v186
    %v378 = vpop.f32.mrb[0].mxu0
    %v379 = vadd.f32 0.0, %v378
    %v380 = vpop.f32.mrb[0].mxu0
    %v381 = vpop.f32.mrb[0].mxu0
    %v382 = vadd.f32 0.0, %v381
    %v383 = vpop.f32.mrb[0].mxu0
    %384 = vmatprep.mubr.bf16.mxu0 %v189
    %385 = vmatmul.mubr.bf16.gmra.mrb[0].mxu0 %v188
    %v386 = vpop.f32.mrb[0].mxu0
    %v387 = vadd.f32 0.0, %v386
    %v388 = vpop.f32.mrb[0].mxu0
    %v389 = vpop.f32.mrb[0].mxu0
    %v390 = vadd.f32 0.0, %v389
    %v391 = vpop.f32.mrb[0].mxu0
    %392 = vmatprep.mubr.bf16.mxu0 %v191
    %393 = vmatmul.mubr.bf16.gmra.mrb[0].mxu0 %v190
    %v394 = vpop.f32.mrb[0].mxu0
    %v395 = vadd.f32 0.0, %v394
    %v396 = vpop.f32.mrb[0].mxu0
    %v397 = vpop.f32.mrb[0].mxu0
    %v398 = vadd.f32 0.0, %v397
    %v399 = vpop.f32.mrb[0].mxu0
    %400 = vdwg.mxu0
    %v401 = vadd.f32 %v80, %v339
    %v402 = vadd.f32 %v81, %v342
    %v403 = vadd.f32 %v82, %v347
    %v404 = vadd.f32 %v83, %v350
    %v405 = vadd.f32 %v84, %v355
    %v406 = vadd.f32 %v85, %v358
    %v407 = vadd.f32 %v86, %v363
    %v408 = vadd.f32 %v87, %v366
    %v409 = vadd.f32 %v88, %v371
    %v410 = vadd.f32 %v89, %v374
    %v411 = vadd.f32 %v90, %v379
    %v412 = vadd.f32 %v91, %v382
    %v413 = vadd.f32 %v92, %v387
    %v414 = vadd.f32 %v93, %v390
    %v415 = vadd.f32 %v94, %v395
    %v416 = vadd.f32 %v95, %v398
    %417 = vst [vmem:[#allocation2] sm:$0xff] %v401
    %418 = vst [vmem:[#allocation2 + $0x8] sm:$0xff] %v402
    %419 = vst [vmem:[#allocation2 + $0x10] sm:$0xff] %v403
    %420 = vst [vmem:[#allocation2 + $0x18] sm:$0xff] %v404
    %421 = vst [vmem:[#allocation2 + $0x20] sm:$0xff] %v405
    %422 = vst [vmem:[#allocation2 + $0x28] sm:$0xff] %v406
    %423 = vst [vmem:[#allocation2 + $0x30] sm:$0xff] %v407
    %424 = vst [vmem:[#allocation2 + $0x38] sm:$0xff] %v408
    %425 = vst [vmem:[#allocation2 + $0x40] sm:$0xff] %v409
    %426 = vst [vmem:[#allocation2 + $0x48] sm:$0xff] %v410
    %427 = vst [vmem:[#allocation2 + $0x50] sm:$0xff] %v411
    %428 = vst [vmem:[#allocation2 + $0x58] sm:$0xff] %v412
    %429 = vst [vmem:[#allocation2 + $0x60] sm:$0xff] %v413
    %430 = vst [vmem:[#allocation2 + $0x68] sm:$0xff] %v414
    %431 = vst [vmem:[#allocation2 + $0x70] sm:$0xff] %v415
    %432 = vst [vmem:[#allocation2 + $0x78] sm:$0xff] %v416
    // Predicated region
    $region26: #{tpu_custom_call.1} parent=1 // pred_check
      %p433 = pneg %p44
    $region27: #{tpu_custom_call.1} parent=1 // pred_check_branch
      %435 = sbr.rel (%p433) target = $region29
    $region28: #{tpu_custom_call.1} parent=1 // pred_region
      %v436 = vld [vmem:[#allocation2] sm:$0xff]
      %v437 = vld [vmem:[#allocation2 + $0x8] sm:$0xff]
      %v438 = vld [vmem:[#allocation2 + $0x10] sm:$0xff]
      %v439 = vld [vmem:[#allocation2 + $0x18] sm:$0xff]
      %v440 = vld [vmem:[#allocation2 + $0x20] sm:$0xff]
      %v441 = vld [vmem:[#allocation2 + $0x28] sm:$0xff]
      %v442 = vld [vmem:[#allocation2 + $0x30] sm:$0xff]
      %v443 = vld [vmem:[#allocation2 + $0x38] sm:$0xff]
      %v444 = vld [vmem:[#allocation2 + $0x40] sm:$0xff]
      %v445 = vld [vmem:[#allocation2 + $0x48] sm:$0xff]
      %v446 = vld [vmem:[#allocation2 + $0x50] sm:$0xff]
      %v447 = vld [vmem:[#allocation2 + $0x58] sm:$0xff]
      %v448 = vld [vmem:[#allocation2 + $0x60] sm:$0xff]
      %v449 = vld [vmem:[#allocation2 + $0x68] sm:$0xff]
      %v450 = vld [vmem:[#allocation2 + $0x70] sm:$0xff]
      %v451 = vld [vmem:[#allocation2 + $0x78] sm:$0xff]
      %v452 = vld [vmem:[%s2] sm:$0x1]
      %v454 = vlaneseq
      %v455 = vshrl.u32 %v454, 7
      %v456 = vsub.s32 0, %v455
      %v457 = vrot.slane %v452, %v456
      %v459 = vadd.f32 %v436, %v457
      %v460 = vadd.f32 %v437, %v457
      %v461 = vadd.f32 %v438, %v457
      %v462 = vadd.f32 %v439, %v457
      %v463 = vadd.f32 %v440, %v457
      %v464 = vadd.f32 %v441, %v457
      %v465 = vadd.f32 %v442, %v457
      %v466 = vadd.f32 %v443, %v457
      %v467 = vadd.f32 %v444, %v457
      %v468 = vadd.f32 %v445, %v457
      %v469 = vadd.f32 %v446, %v457
      %v470 = vadd.f32 %v447, %v457
      %v471 = vadd.f32 %v448, %v457
      %v472 = vadd.f32 %v449, %v457
      %v473 = vadd.f32 %v450, %v457
      %v474 = vadd.f32 %v451, %v457
      %v475 = vmax.f32 %v459, 0.0
      %v476 = vmax.f32 %v460, 0.0
      %v477 = vmax.f32 %v461, 0.0
      %v478 = vmax.f32 %v462, 0.0
      %v479 = vmax.f32 %v463, 0.0
      %v480 = vmax.f32 %v464, 0.0
      %v481 = vmax.f32 %v465, 0.0
      %v482 = vmax.f32 %v466, 0.0
      %v483 = vmax.f32 %v467, 0.0
      %v484 = vmax.f32 %v468, 0.0
      %v485 = vmax.f32 %v469, 0.0
      %v486 = vmax.f32 %v470, 0.0
      %v487 = vmax.f32 %v471, 0.0
      %v488 = vmax.f32 %v472, 0.0
      %v489 = vmax.f32 %v473, 0.0
      %v490 = vmax.f32 %v474, 0.0
      %491 = vst [vmem:[#allocation8] sm:$0xff] %v475
      %492 = vst [vmem:[#allocation8 + $0x8] sm:$0xff] %v476
      %493 = vst [vmem:[#allocation8 + $0x10] sm:$0xff] %v477
      %494 = vst [vmem:[#allocation8 + $0x18] sm:$0xff] %v478
      %495 = vst [vmem:[#allocation8 + $0x20] sm:$0xff] %v479
      %496 = vst [vmem:[#allocation8 + $0x28] sm:$0xff] %v480
      %497 = vst [vmem:[#allocation8 + $0x30] sm:$0xff] %v481
      %498 = vst [vmem:[#allocation8 + $0x38] sm:$0xff] %v482
      %499 = vst [vmem:[#allocation8 + $0x40] sm:$0xff] %v483
      %500 = vst [vmem:[#allocation8 + $0x48] sm:$0xff] %v484
      %501 = vst [vmem:[#allocation8 + $0x50] sm:$0xff] %v485
      %502 = vst [vmem:[#allocation8 + $0x58] sm:$0xff] %v486
      %503 = vst [vmem:[#allocation8 + $0x60] sm:$0xff] %v487
      %504 = vst [vmem:[#allocation8 + $0x68] sm:$0xff] %v488
      %505 = vst [vmem:[#allocation8 + $0x70] sm:$0xff] %v489
      %506 = vst [vmem:[#allocation8 + $0x78] sm:$0xff] %v490
    $region29: #{tpu_custom_call.1} parent=1 // pred_fallthru
      _
    // Predicated region
    $region30: #{tpu_custom_call.1} parent=1 // pred_check
      _
    $region31: #{tpu_custom_call.1} parent=1 // pred_check_branch
      %508 = sbr.rel (0) target = $region33
    $region32: #{tpu_custom_call.1} parent=1 // pred_region
      %s510 = ssub.s32 2048, 2048
      %511 = vsyncadd [#allocation5], %s510
      %s512 = sshll.u32 [#allocation8], 4
      %s513 = int_to_ptr.vmem [resolvable:$true] %s512
      %518 = dma.vmem_to_hbm [thread:$0]  %s513, 2048, %s3, [#allocation5], 128, 128, 8
    $region33: #{tpu_custom_call.1} parent=1 // pred_fallthru
      _
    // Predicated region
    $region34: #{tpu_custom_call.1} parent=1 // pred_check
      _
    $region35: #{tpu_custom_call.1} parent=1 // pred_check_branch
      %520 = sbr.rel (0) target = $region37
    $region36: #{tpu_custom_call.1} parent=1 // pred_region
      %521 = dma.done [#allocation5], 2048
    $region37: #{tpu_custom_call.1} parent=1 // pred_fallthru
      _
    %522 = vsyncpa [#allocation4], 1
    %523 = vsyncpa [#allocation7], 1
    %524 = vsyncpa [#allocation5], 1

</llo_original>
